<compile_context>
chip_gen: v7x
topology: tpu7x:2x2x1
jax: 0.10.0
libtpu: 0.0.40
codegen_flags: <defaults>
</compile_context>

<pallas_src>
import math
import functools
import jax
import jax.numpy as jnp
from jax.experimental import pallas as pl
from jax.experimental.pallas import tpu as pltpu


def _round_up(v, m):
    return ((v + m - 1) // m) * m


def _linear_sigmoid_kernel(x_ref, w_ref, b_ref, o_ref):
    # x_ref: (tm, tk) bf16 activations tile
    # w_ref: (tk, tn) bf16 weight tile, already (Cin, Cout) layout -> no transpose
    # b_ref: (1,  tn) f32 bias tile
    # o_ref: (tm, tn) f32 output tile, resident across the K grid axis (accumulator)
    k = pl.program_id(2)

    @pl.when(k == 0)
    def _():
        o_ref[...] = jnp.zeros_like(o_ref)

    # bf16 x bf16 -> f32 on the MXU; contraction dim is already on the
    # sublane axis of w_ref, so no in-kernel relayout is needed.
    o_ref[...] += jnp.dot(
        x_ref[...], w_ref[...], preferred_element_type=jnp.float32
    )

    @pl.when(k == pl.num_programs(2) - 1)
    def _():
        # Bias + sigmoid exactly once on the f32 accumulator.
        pre = o_ref[...] + b_ref[...]
        # sigmoid(z) = 1 / (1 + exp(-z)); approx reciprocal runs on the EUP slot.
        o_ref[...] = pl.reciprocal(1.0 + jnp.exp(-pre), approx=True)


@functools.partial(
    jax.jit, static_argnames=("n_out", "tm", "tn", "tk", "compute_dtype")
)
def linear_block_forward(x, w_t, b_p, n_out, *, tm=512, tn=512, tk=1024,
                         compute_dtype=jnp.bfloat16):
    """x: (B, Cin) f32.  w_t: (Kp, Np) pre-transposed/padded/cast weight.
    b_p: (1, Np) f32 padded bias.  n_out: original Cout (for un-padding)."""
    M, K = x.shape
    Kp, Np = w_t.shape

    # Tile clamping: M aligned to 16 (bf16 sublane packing), N/K lane-dense 128.
    tm = min(tm, _round_up(M, 16))
    tn = min(tn, Np)
    tk = min(tk, Kp)
    Mp = _round_up(M, tm)

    # v7x megacore: if M only yields one parallel block, try to split N into 2.
    if Mp // tm == 1 and Np // tn == 1 and Np % 256 == 0:
        tn = Np // 2

    grid_m, grid_n, grid_k = Mp // tm, Np // tn, Kp // tk

    # Pad + cast activations (weights/bias were prepared once, outside).
    if Mp != M or Kp != K:
        x_p = jnp.pad(x, ((0, Mp - M), (0, Kp - K)))
    else:
        x_p = x
    x_p = x_p.astype(compute_dtype)

    # Generation-aware VMEM budget.  tile_bytes already counts the x2
    # double-buffering, so no extra multiplier here.
    itemsize = jnp.dtype(compute_dtype).itemsize
    tile_bytes = (
        2 * tm * tk * itemsize    # x, double-buffered
        + 2 * tk * tn * itemsize  # weight, double-buffered
        + 2 * tn * 4              # bias, double-buffered
        + 2 * tm * tn * 4         # f32 output/accumulator, double-buffered
    )
    try:
        vmem_cap = int(pltpu.get_tpu_info().vmem_capacity_bytes)
    except Exception:
        vmem_cap = 64 * 1024 * 1024
    vmem_limit = int(min(max(tile_bytes + (8 << 20), 16 << 20), 0.55 * vmem_cap))

    # Bytes reflect actual re-read traffic: x is read grid_n times, W grid_m times.
    cost = pl.CostEstimate(
        flops=2 * Mp * Kp * Np,
        transcendentals=Mp * Np,
        bytes_accessed=(
            Mp * Kp * itemsize * grid_n
            + Kp * Np * itemsize * grid_m
            + Np * 4 * grid_m
            + Mp * Np * 4
        ),
    )

    out_p = pl.pallas_call(
        _linear_sigmoid_kernel,
        out_shape=jax.ShapeDtypeStruct((Mp, Np), jnp.float32),
        grid_spec=pltpu.PrefetchScalarGridSpec(
            num_scalar_prefetch=0,
            grid=(grid_m, grid_n, grid_k),
            in_specs=[
                pl.BlockSpec((tm, tk), lambda i, j, k: (i, k)),  # x
                pl.BlockSpec((tk, tn), lambda i, j, k: (k, j)),  # W^T (Cin, Cout)
                pl.BlockSpec((1, tn), lambda i, j, k: (0, j)),   # bias
            ],
            out_specs=pl.BlockSpec((tm, tn), lambda i, j, k: (i, j)),
        ),
        compiler_params=pltpu.CompilerParams(
            dimension_semantics=("parallel", "parallel", "arbitrary"),
            vmem_limit_bytes=vmem_limit,
        ),
        cost_estimate=cost,
    )(x_p, w_t, b_p)

    if Mp != M or Np != n_out:
        out_p = out_p[:M, :n_out]
    return out_p


def prepare_linear_params(weight, bias, *, tn=512, tk=1024,
                          compute_dtype=jnp.bfloat16):
    """One-time prep (hoisted out of the forward path): transpose the PyTorch
    (Cout, Cin) weight to (Cin, Cout), pad to tile multiples, cast to bf16."""
    N, K = weight.shape
    tn = min(tn, _round_up(N, 128))
    tk = min(tk, _round_up(K, 128))
    Np, Kp = _round_up(N, tn), _round_up(K, tk)
    w_t = jnp.pad(weight.T, ((0, Kp - K), (0, Np - N))).astype(compute_dtype)
    b_p = jnp.pad(bias, (0, Np - N)).astype(jnp.float32).reshape(1, Np)
    return w_t, b_p, N


def make_linear_block(weight, bias, *, tm=512, tn=512, tk=1024,
                      compute_dtype=jnp.bfloat16):
    w_t, b_p, n_out = prepare_linear_params(
        weight, bias, tn=tn, tk=tk, compute_dtype=compute_dtype
    )

    def forward(x):
        return linear_block_forward(
            x, w_t, b_p, n_out, tm=tm, tn=tn, tk=tk, compute_dtype=compute_dtype
        )

    return forward


def init_linear_params(key, inchannel, outchannel):
    # PyTorch nn.Linear default init: U(-1/sqrt(in), 1/sqrt(in)) for W and b.
    kw, kb = jax.random.split(key)
    bound = 1.0 / math.sqrt(inchannel)
    weight = jax.random.uniform(
        kw, (outchannel, inchannel), jnp.float32, minval=-bound, maxval=bound
    )
    bias = jax.random.uniform(
        kb, (outchannel,), jnp.float32, minval=-bound, maxval=bound
    )
    return weight, bias


if __name__ == "__main__":
    inchannel, outchannel = 32, 32
    batch = 8

    key = jax.random.PRNGKey(0)
    kx, kp = jax.random.split(key)
    x = jax.random.normal(kx, (batch, inchannel), jnp.float32)
    weight, bias = init_linear_params(kp, inchannel, outchannel)

    forward = make_linear_block(weight, bias)
    out = jax.block_until_ready(forward(x))

    # Reference (same math as torch: sigmoid(x @ W^T + b)); bf16 MXU inputs +
    # approx reciprocal loosen agreement vs the pure-f32 reference.
    ref = jax.nn.sigmoid(x @ weight.T + bias)
    assert out.shape == (batch, outchannel)
    assert jnp.allclose(out, ref, atol=2e-2, rtol=2e-2)

    print("KERNEL_OK")
</pallas_src>

<mosaic_0001>
module attributes {stable_mosaic.version = 11 : i64} {
  func.func @_linear_sigmoid_kernel(%arg0: i32, %arg1: i32, %arg2: i32, %arg3: memref<16x128xbf16, #tpu.memory_space<vmem>>, %arg4: memref<128x128xbf16, #tpu.memory_space<vmem>>, %arg5: memref<1x128xf32, #tpu.memory_space<vmem>>, %arg6: memref<16x128xf32, #tpu.memory_space<vmem>>) attributes {dimension_semantics = [#tpu.dimension_semantics<parallel>, #tpu.dimension_semantics<parallel>, #tpu.dimension_semantics<arbitrary>], iteration_bounds = array<i64: 1, 1, 1>, scalar_prefetch = 0 : i64, scratch_operands = 0 : i64, tpu.core_type = #tpu.core_type<tc>, window_params = [{transform_indices = @transform_0, window_bounds = array<i64: 16, 128>}, {transform_indices = @transform_1, window_bounds = array<i64: 128, 128>}, {transform_indices = @transform_2, window_bounds = array<i64: 1, 128>}, {transform_indices = @transform_3, window_bounds = array<i64: 16, 128>}]} {
    %c0_i32 = arith.constant 0 : i32
    %0 = arith.cmpi eq, %arg2, %c0_i32 : i32
    %1 = arith.extui %0 : i1 to i32
    %c0_i32_0 = arith.constant 0 : i32
    %2 = arith.cmpi ne, %1, %c0_i32_0 : i32
    scf.if %2 {
      %cst_10 = arith.constant 0.000000e+00 : f32
      %12 = vector.broadcast %cst_10 : f32 to vector<16x128xf32>
      %c0_11 = arith.constant 0 : index
      %c0_12 = arith.constant 0 : index
      %13 = vector.load %arg6[%c0_11, %c0_12] : memref<16x128xf32, #tpu.memory_space<vmem>>, vector<16x128xf32>
      tpu.vector_store %arg6[%c0_11, %c0_12], %12 {strides = array<i32>} : memref<16x128xf32, #tpu.memory_space<vmem>>, vector<16x128xf32>,
    } else {
    }
    %c0 = arith.constant 0 : index
    %c0_1 = arith.constant 0 : index
    %3 = vector.load %arg6[%c0, %c0_1] : memref<16x128xf32, #tpu.memory_space<vmem>>, vector<16x128xf32>
    %c0_2 = arith.constant 0 : index
    %c0_3 = arith.constant 0 : index
    %4 = vector.load %arg3[%c0_2, %c0_3] : memref<16x128xbf16, #tpu.memory_space<vmem>>, vector<16x128xbf16>
    %c0_4 = arith.constant 0 : index
    %c0_5 = arith.constant 0 : index
    %5 = vector.load %arg4[%c0_4, %c0_5] : memref<128x128xbf16, #tpu.memory_space<vmem>>, vector<128x128xbf16>
    %cst = arith.constant dense<0.000000e+00> : vector<16x128xf32>
    %6 = tpu.matmul %4, %5, %cst {dimension_numbers = #tpu.dot_dimension_numbers<[1], [0], [0], [1], [0, 0, 1, 1], [], []>} : vector<16x128xbf16>, vector<128x128xbf16>, vector<16x128xf32> -> vector<16x128xf32>
    %7 = arith.addf %3, %6 : vector<16x128xf32>
    %c0_6 = arith.constant 0 : index
    %c0_7 = arith.constant 0 : index
    %8 = vector.load %arg6[%c0_6, %c0_7] : memref<16x128xf32, #tpu.memory_space<vmem>>, vector<16x128xf32>
    tpu.vector_store %arg6[%c0_6, %c0_7], %7 {strides = array<i32>} : memref<16x128xf32, #tpu.memory_space<vmem>>, vector<16x128xf32>,
    %c0_i32_8 = arith.constant 0 : i32
    %9 = arith.cmpi eq, %arg2, %c0_i32_8 : i32
    %10 = arith.extui %9 : i1 to i32
    %c0_i32_9 = arith.constant 0 : i32
    %11 = arith.cmpi ne, %10, %c0_i32_9 : i32
    scf.if %11 {
      %c0_10 = arith.constant 0 : index
      %c0_11 = arith.constant 0 : index
      %12 = vector.load %arg6[%c0_10, %c0_11] : memref<16x128xf32, #tpu.memory_space<vmem>>, vector<16x128xf32>
      %c0_12 = arith.constant 0 : index
      %c0_13 = arith.constant 0 : index
      %13 = vector.load %arg5[%c0_12, %c0_13] : memref<1x128xf32, #tpu.memory_space<vmem>>, vector<1x128xf32>
      %14 = vector.broadcast %13 : vector<1x128xf32> to vector<16x128xf32>
      %15 = arith.addf %12, %14 : vector<16x128xf32>
      %cst_14 = arith.constant 0.000000e+00 : f32
      %16 = vector.broadcast %cst_14 : f32 to vector<16x128xf32>
      %17 = arith.subf %16, %15 : vector<16x128xf32>
      %18 = math.exp %17 : vector<16x128xf32>
      %cst_15 = arith.constant 1.000000e+00 : f32
      %19 = vector.broadcast %cst_15 : f32 to vector<16x128xf32>
      %20 = arith.addf %19, %18 : vector<16x128xf32>
      %21 = tpu.reciprocal %20 {approx = true} : vector<16x128xf32> -> vector<16x128xf32>
      %c0_16 = arith.constant 0 : index
      %c0_17 = arith.constant 0 : index
      %22 = vector.load %arg6[%c0_16, %c0_17] : memref<16x128xf32, #tpu.memory_space<vmem>>, vector<16x128xf32>
      tpu.vector_store %arg6[%c0_16, %c0_17], %21 {strides = array<i32>} : memref<16x128xf32, #tpu.memory_space<vmem>>, vector<16x128xf32>,
    } else {
    }
    return
  }
  func.func @transform_0(%arg0: i32, %arg1: i32, %arg2: i32) -> (i32, i32) {
    %c0_i32 = arith.constant 0 : i32
    return %arg0, %arg2 : i32, i32
  }
  func.func @transform_1(%arg0: i32, %arg1: i32, %arg2: i32) -> (i32, i32) {
    %c0_i32 = arith.constant 0 : i32
    return %arg2, %arg1 : i32, i32
  }
  func.func @transform_2(%arg0: i32, %arg1: i32, %arg2: i32) -> (i32, i32) {
    %c0_i32 = arith.constant 0 : i32
    %c0_i32_0 = arith.constant 0 : i32
    return %c0_i32, %arg1 : i32, i32
  }
  func.func @transform_3(%arg0: i32, %arg1: i32, %arg2: i32) -> (i32, i32) {
    %c0_i32 = arith.constant 0 : i32
    return %arg0, %arg1 : i32, i32
  }
}

</mosaic_0001>

<llo_original>
// kernel: linear_block_forward.1
$region0: #{linear_block_forward.1}
  #allocation0 [shape = 'u32[]', space=smem, size = 0x4, offset = 0x4, fixed_abs, tag = 'smem constant byte address 0x4 - core index']
  #allocation1 [shape = 'u32[144,128]{1,0:T(1,128)}', space=vmem, size = 0x12000, scoped, tag = 'internal scratch']
  %s0 = inlined_call_operand.vmem [shape: bf16[16,128], index: 0, kind: input, shape index: {}]
  %s1 = inlined_call_operand.hbm [shape: bf16[128,128], index: 1, kind: input, shape index: {}]
  %s2 = inlined_call_operand.vmem [shape: f32[1,128], index: 2, kind: input, shape index: {}]
  %s3 = inlined_call_operand.vmem [shape: f32[16,128], index: 3, kind: output, shape index: {}]
  %s4 = sld [smem:[#allocation0]]
  $region34: #{linear_block_forward.1} parent=0
    _
  %s6 = ssub.s32 1, %s4
  %s7 = scalar_select 0, %s6, %s4
  $region1: #{linear_block_forward.1} parent=0
    #allocation2 [shape = 'u8[32768]{0}', space=vmem, size = 0x8000, scoped, tag = 'input window, operand 1, single buffered']
    #allocation3 [shape = 's32[1]{0}', space=sflag, size = 0x4, scoped, tag = 'scoped memory for linear_block_forward.1']
    %8 = vsyncpa [#allocation3], 0
    // Predicated region
    $region2: #{linear_block_forward.1} parent=1 // pred_check
      _
    $region3: #{linear_block_forward.1} parent=1 // pred_check_branch
      %10 = sbr.rel (0) target = $region5
    $region4: #{linear_block_forward.1} parent=1 // pred_region
      _
    $region5: #{linear_block_forward.1} parent=1 // pred_fallthru
      _
    // Predicated region
    $region6: #{linear_block_forward.1} parent=1 // pred_check
      _
    $region7: #{linear_block_forward.1} parent=1 // pred_check_branch
      %12 = sbr.rel (0) target = $region9
    $region8: #{linear_block_forward.1} parent=1 // pred_region
      %s14 = ssub.s32 1024, 1024
      %15 = vsyncadd [#allocation3], %s14
      %s16 = sshll.u32 [#allocation2], 4
      %s17 = int_to_ptr.vmem [resolvable:$true] %s16
      %22 = dma.hbm_to_vmem [thread:$0]  %s1, 1024, %s17, [#allocation3], 64, 64, 4
    $region9: #{linear_block_forward.1} parent=1 // pred_fallthru
      _
    // Predicated region
    $region10: #{linear_block_forward.1} parent=1 // pred_check
      _
    $region11: #{linear_block_forward.1} parent=1 // pred_check_branch
      %24 = sbr.rel (0) target = $region13
    $region12: #{linear_block_forward.1} parent=1 // pred_region
      _
    $region13: #{linear_block_forward.1} parent=1 // pred_fallthru
      _
    // Predicated region
    $region14: #{linear_block_forward.1} parent=1 // pred_check
      _
    $region15: #{linear_block_forward.1} parent=1 // pred_check_branch
      %26 = sbr.rel (0) target = $region17
    $region16: #{linear_block_forward.1} parent=1 // pred_region
      %27 = dma.done [#allocation3], 1024
    $region17: #{linear_block_forward.1} parent=1 // pred_fallthru
      _
    %p29 = scmp.eq.s32.totalorder 0, 0
    // Predicated region
    $region18: #{linear_block_forward.1} parent=1 // pred_check
      %p30 = pneg %p29
    $region19: #{linear_block_forward.1} parent=1 // pred_check_branch
      %32 = sbr.rel (%p30) target = $region21
    $region20: #{linear_block_forward.1} parent=1 // pred_region
      %33 = vst [vmem:[%s3] sm:$0xff] 0.0
      %34 = vst [vmem:[%s3 + $0x8] sm:$0xff] 0.0
    $region21: #{linear_block_forward.1} parent=1 // pred_fallthru
      _
    %v35 = vld [vmem:[%s3] sm:$0xff]
    %v36 = vld [vmem:[%s3 + $0x8] sm:$0xff]
    %v37 = vld [vmem:[%s0] sm:$0xf]
    %v38 = vld [vmem:[%s0 + $0x4] sm:$0xf]
    %v39 = vld [vmem:[#allocation2] sm:$0xf]
    %v40 = vld [vmem:[#allocation2 + $0x4] sm:$0xf]
    %v41 = vld [vmem:[#allocation2 + $0x8] sm:$0xf]
    %v42 = vld [vmem:[#allocation2 + $0xc] sm:$0xf]
    %v43 = vld [vmem:[#allocation2 + $0x10] sm:$0xf]
    %v44 = vld [vmem:[#allocation2 + $0x14] sm:$0xf]
    %v45 = vld [vmem:[#allocation2 + $0x18] sm:$0xf]
    %v46 = vld [vmem:[#allocation2 + $0x1c] sm:$0xf]
    %v47 = vld [vmem:[#allocation2 + $0x20] sm:$0xf]
    %v48 = vld [vmem:[#allocation2 + $0x24] sm:$0xf]
    %v49 = vld [vmem:[#allocation2 + $0x28] sm:$0xf]
    %v50 = vld [vmem:[#allocation2 + $0x2c] sm:$0xf]
    %v51 = vld [vmem:[#allocation2 + $0x30] sm:$0xf]
    %v52 = vld [vmem:[#allocation2 + $0x34] sm:$0xf]
    %v53 = vld [vmem:[#allocation2 + $0x38] sm:$0xf]
    %v54 = vld [vmem:[#allocation2 + $0x3c] sm:$0xf]
    %v57 = vunpack.c.l.b16 %v37
    %v58 = vunpack.c.l.b16 %v38
    %v59 = vpack.c.b16 %v58, %v57
    %v77 = vunpack.c.l.b16 %v39
    %v78 = vunpack.c.l.b16 %v40
    %v79 = vunpack.c.l.b16 %v41
    %v80 = vunpack.c.l.b16 %v42
    %v81 = vunpack.c.l.b16 %v43
    %v82 = vunpack.c.l.b16 %v44
    %v83 = vunpack.c.l.b16 %v45
    %v84 = vunpack.c.l.b16 %v46
    %v85 = vunpack.c.l.b16 %v47
    %v86 = vunpack.c.l.b16 %v48
    %v87 = vunpack.c.l.b16 %v49
    %v88 = vunpack.c.l.b16 %v50
    %v89 = vunpack.c.l.b16 %v51
    %v90 = vunpack.c.l.b16 %v52
    %v91 = vunpack.c.l.b16 %v53
    %v92 = vunpack.c.l.b16 %v54
    %v93 = vpack.c.b16 %v78, %v77
    %v94 = vpack.c.b16 %v80, %v79
    %v95 = vpack.c.b16 %v82, %v81
    %v96 = vpack.c.b16 %v84, %v83
    %v97 = vpack.c.b16 %v86, %v85
    %v98 = vpack.c.b16 %v88, %v87
    %v99 = vpack.c.b16 %v90, %v89
    %v100 = vpack.c.b16 %v92, %v91
    %109 = vmatprep.subr.bf16.mxu0 0
    %110 = vmatpush1.bf16.msra.mxu0 %v93
    %111 = vmatprep.subr.bf16.mxu0 0
    %112 = vmatpush1.bf16.msra.mxu0 %v94
    %113 = vmatprep.subr.bf16.mxu0 0
    %114 = vmatpush1.bf16.msra.mxu0 %v95
    %115 = vmatprep.subr.bf16.mxu0 0
    %116 = vmatpush1.bf16.msra.mxu0 %v96
    %117 = vmatprep.subr.bf16.mxu0 0
    %118 = vmatpush1.bf16.msra.mxu0 %v97
    %119 = vmatprep.subr.bf16.mxu0 0
    %120 = vmatpush1.bf16.msra.mxu0 %v98
    %121 = vmatprep.subr.bf16.mxu0 0
    %122 = vmatpush1.bf16.msra.mxu0 %v99
    %123 = vmatprep.subr.bf16.mxu0 0
    %124 = vmatpush1.bf16.msra.mxu0 %v100
    %125 = vmatprep.subr.bf16.mxu0 0
    %126 = vmatpush1.bf16.msra.mxu0 0
    %127 = vmatprep.subr.bf16.mxu0 0
    %128 = vmatpush1.bf16.msra.mxu0 0
    %129 = vmatprep.subr.bf16.mxu0 0
    %130 = vmatpush1.bf16.msra.mxu0 0
    %131 = vmatprep.subr.bf16.mxu0 0
    %132 = vmatpush1.bf16.msra.mxu0 0
    %133 = vmatprep.subr.bf16.mxu0 0
    %134 = vmatpush1.bf16.msra.mxu0 0
    %135 = vmatprep.subr.bf16.mxu0 0
    %136 = vmatpush1.bf16.msra.mxu0 0
    %137 = vmatprep.subr.bf16.mxu0 0
    %138 = vmatpush1.bf16.msra.mxu0 0
    %139 = vmatprep.subr.bf16.mxu0 0
    %140 = vmatpush1.bf16.msra.mxu0 0
    %141 = vmatprep.mubr.bf16.mxu0 0
    %142 = vmatmul.mubr.bf16.gmra.mrb[0].mxu0 %v59
    %v143 = vpop.f32.mrb[0].mxu0
    %v144 = vadd.f32 0.0, %v143
    %v145 = vpop.f32.mrb[0].mxu0
    %v146 = vpop.f32.mrb[0].mxu0
    %v147 = vadd.f32 0.0, %v146
    %v148 = vpop.f32.mrb[0].mxu0
    %149 = vdwg.mxu0
    %v150 = vadd.f32 %v35, %v144
    %v151 = vadd.f32 %v36, %v147
    %152 = vst [vmem:[%s3] sm:$0xff] %v150
    %153 = vst [vmem:[%s3 + $0x8] sm:$0xff] %v151
    // Predicated region
    $region22: #{linear_block_forward.1} parent=1 // pred_check
      %p154 = pneg %p29
    $region23: #{linear_block_forward.1} parent=1 // pred_check_branch
      %156 = sbr.rel (%p154) target = $region25
    $region24: #{linear_block_forward.1} parent=1 // pred_region
      %v157 = vld [vmem:[%s3] sm:$0xff]
      %v158 = vld [vmem:[%s3 + $0x8] sm:$0xff]
      %v159 = vld [vmem:[%s2] sm:$0x1]
      %v161 = vlaneseq
      %v162 = vshrl.u32 %v161, 7
      %v163 = vsub.s32 0, %v162
      %v164 = vrot.slane %v159, %v163
      %v166 = vadd.f32 %v157, %v164
      %v167 = vadd.f32 %v158, %v164
      %v168 = vsub.f32 0.0, %v166
      %v169 = vsub.f32 0.0, %v167
      %v170 = vmul.f32 %v168, 1.442695
      %v171 = vpow.pop %v170
      %v172 = vmul.f32 %v169, 1.442695
      %v173 = vpow.pop %v172
      %v174 = vadd.f32 %v171, 1.0
      %v175 = vadd.f32 %v173, 1.0
      %v176 = vrcp.pop %v174
      %v177 = vrcp.pop %v175
      %178 = vst [vmem:[%s3] sm:$0xff] %v176
      %179 = vst [vmem:[%s3 + $0x8] sm:$0xff] %v177
    $region25: #{linear_block_forward.1} parent=1 // pred_fallthru
      _
    // Predicated region
    $region26: #{linear_block_forward.1} parent=1 // pred_check
      _
    $region27: #{linear_block_forward.1} parent=1 // pred_check_branch
      %181 = sbr.rel (0) target = $region29
    $region28: #{linear_block_forward.1} parent=1 // pred_region
      _
    $region29: #{linear_block_forward.1} parent=1 // pred_fallthru
      _
    // Predicated region
    $region30: #{linear_block_forward.1} parent=1 // pred_check
      _
    $region31: #{linear_block_forward.1} parent=1 // pred_check_branch
      %183 = sbr.rel (0) target = $region33
    $region32: #{linear_block_forward.1} parent=1 // pred_region
      _
    $region33: #{linear_block_forward.1} parent=1 // pred_fallthru
      _
    %184 = vsyncpa [#allocation3], 1

</llo_original>
